<compile_context>
chip_gen: v7x
topology: tpu7x:2x2x1
jax: 0.10.0
libtpu: 0.0.40
codegen_flags: <defaults>
</compile_context>

<pallas_src>
import jax
import jax.numpy as jnp
from jax.experimental import pallas as pl
from jax.experimental.pallas import tpu as pltpu

_LANE = 128


def _round_up(n, m):
    return -(-n // m) * m


def ae_kernel(xT_ref,
              w1_ref, b1_ref,   # encoder_1 : (h1, d_in), (h1, 1)    tanh
              w2_ref, b2_ref,   # encoder_2 : (d_z, h1),  (d_z, 1)   tanh
              w3_ref, b3_ref,   # decoder 0 : (h2, d_z),  (h2, 1)    tanh
              w4_ref, b4_ref,   # decoder 1 : (d_out, h2),(d_out, 1) linear
              recT_ref, zT_ref):
    x = xT_ref[...]                                            # (d_in, tb)

    # encoder_1: (h1, d_in) @ (d_in, tb) -> (h1, tb), f32 accumulation (MXU).
    h = jnp.tanh(jnp.dot(w1_ref[...], x,
                         preferred_element_type=jnp.float32) + b1_ref[...])

    # encoder_2: (d_z, h1) @ (h1, tb) -> (d_z, tb).
    z = jnp.tanh(jnp.dot(w2_ref[...], h.astype(w2_ref.dtype),
                         preferred_element_type=jnp.float32) + b2_ref[...])

    # decoder layer 0: (h2, d_z) @ (d_z, tb).  K = d_z is tiny but the MXU is
    # idle at this point and this generalizes to any d_z (no hardcoded K=2
    # lane-slice path, which previously silently assumed d_z == 2).
    d = jnp.tanh(jnp.dot(w3_ref[...], z.astype(w3_ref.dtype),
                         preferred_element_type=jnp.float32) + b3_ref[...])

    # decoder layer 1: (d_out, h2) @ (h2, tb), no activation.
    rec = jnp.dot(w4_ref[...], d.astype(w4_ref.dtype),
                  preferred_element_type=jnp.float32) + b4_ref[...]

    recT_ref[...] = rec.astype(recT_ref.dtype)
    zT_ref[...] = z.astype(zT_ref.dtype)


def _choose_tiling(B, max_tile=16384, target_steps=8):
    """Return (batch_tile, padded_batch)."""
    bp128 = _round_up(B, _LANE)
    if bp128 <= 4096:
        # Small batch: per-step overhead dominates -> 1 tile, or 2 lane-dense
        # tiles so v7x's two TensorCores each take half when there is enough
        # work to matter.
        if bp128 >= 2048 and bp128 % (2 * _LANE) == 0:
            return bp128 // 2, bp128
        return bp128, bp128
    # Large batch: >= target_steps grid steps (>=4 per TensorCore on v7x) so
    # the software pipeline reaches steady state (DMA of tile i+1 overlaps
    # compute of i and writeback of i-1), with 2K-16K row tiles so the
    # ~0.35 us per-step overhead stays small.  Pad B up to a tile multiple
    # instead of forcing the tile to divide B (handles ragged batches).
    tile = max(2048, min(max_tile, bp128 // target_steps))
    tile = (tile // _LANE) * _LANE
    return tile, _round_up(B, tile)


def ae_net_forward(x, params, *, batch_tile=None,
                   storage_dtype=jnp.bfloat16, out_dtype=jnp.float32):
    """AE_net forward (non-hierarchical).

    x: (B, d_in).  params: list of 4 (W, b) pairs with W in PyTorch (out, in)
    layout.  Returns (rec_x, latent_z) as (B, d_out) / (B, d_z) in out_dtype.

    storage_dtype: dtype of x / weights as stored and DMA'd.  bf16 (default)
    halves HBM traffic on every generation (v5e is the most HBM-bound);
    accumulation stays f32 via preferred_element_type and tanh / bias math
    stays f32, so only input-rounding error is introduced.
    """
    B, d_in = x.shape
    (w1, b1), (w2, b2), (w3, b3), (w4, b4) = params
    h1 = w1.shape[0]
    d_z = w2.shape[0]
    h2 = w3.shape[0]
    d_out = w4.shape[0]
    assert w1.shape == (h1, d_in) and w2.shape == (d_z, h1)
    assert w3.shape == (h2, d_z) and w4.shape == (d_out, h2)

    if batch_tile is None:
        tb, Bp = _choose_tiling(B)
    else:
        tb = batch_tile
        assert tb % _LANE == 0, tb
        Bp = _round_up(B, tb)
    grid = Bp // tb

    # Host-side (XLA) prep, once per call:
    #  - weights keep PyTorch (out, in) layout (feature-major needs no
    #    transpose), cast to storage_dtype,
    #  - biases stay f32 (bytes-negligible), reshaped to (out, 1) so the
    #    in-kernel add is a plain lane-broadcast VPU op,
    #  - x is cast, zero-padded to Bp rows and transposed to (d_in, Bp) so the
    #    batch axis is the lane axis inside the kernel.
    def prep_w(w):
        return jnp.asarray(w, storage_dtype)

    def prep_b(b):
        return jnp.asarray(b, jnp.float32).reshape(-1, 1)

    w1s, w2s, w3s, w4s = prep_w(w1), prep_w(w2), prep_w(w3), prep_w(w4)
    b1r, b2r, b3r, b4r = prep_b(b1), prep_b(b2), prep_b(b3), prep_b(b4)

    xs = jnp.asarray(x, storage_dtype)
    if Bp != B:
        xs = jnp.pad(xs, ((0, Bp - B), (0, 0)))
    xT = xs.T                                               # (d_in, Bp)

    # Grid-invariant operands: constant index_map means Mosaic's pipeline does
    # not re-issue their DMAs on later grid steps.
    def const_spec(arr):
        return pl.BlockSpec(arr.shape, lambda i: (0, 0))

    grid_spec = pltpu.PrefetchScalarGridSpec(
        num_scalar_prefetch=0,
        grid=(grid,),
        in_specs=[
            pl.BlockSpec((d_in, tb), lambda i: (0, i)),     # xT tile
            const_spec(w1s), const_spec(b1r),
            const_spec(w2s), const_spec(b2r),
            const_spec(w3s), const_spec(b3r),
            const_spec(w4s), const_spec(b4r),
        ],
        out_specs=[
            pl.BlockSpec((d_out, tb), lambda i: (0, i)),    # recT tile
            pl.BlockSpec((d_z, tb), lambda i: (0, i)),      # zT tile
        ],
    )

    x_bytes = jnp.dtype(storage_dtype).itemsize
    o_bytes = jnp.dtype(out_dtype).itemsize
    w_bytes = (x_bytes * (w1.size + w2.size + w3.size + w4.size)
               + 4 * (b1.size + b2.size + b3.size + b4.size))
    cost = pl.CostEstimate(
        flops=2 * Bp * (d_in * h1 + h1 * d_z + d_z * h2 + h2 * d_out),
        transcendentals=Bp * (h1 + d_z + h2),
        bytes_accessed=Bp * (d_in * x_bytes + (d_out + d_z) * o_bytes) + w_bytes,
    )

    recT, zT = pl.pallas_call(
        ae_kernel,
        out_shape=(
            jax.ShapeDtypeStruct((d_out, Bp), out_dtype),
            jax.ShapeDtypeStruct((d_z, Bp), out_dtype),
        ),
        grid_spec=grid_spec,
        compiler_params=pltpu.CompilerParams(
            dimension_semantics=("parallel",),
            # 16K-row tiles + double-buffered IO + f32 intermediates stay well
            # under 32 MiB; raising the scoped limit keeps v5e's 16 MiB default
            # from being the binding constraint.
            vmem_limit_bytes=32 * 1024 * 1024,
        ),
        cost_estimate=cost,
    )(xT, w1s, b1r, w2s, b2r, w3s, b3r, w4s, b4r)

    # Back to the module's row-major (B, feat) convention; drop padded rows.
    rec_x = recT[:, :B].T
    latent_z = zT[:, :B].T
    return rec_x, latent_z


def xavier_uniform(key, out_dim, in_dim):
    limit = jnp.sqrt(6.0 / (in_dim + out_dim))
    return jax.random.uniform(key, (out_dim, in_dim), jnp.float32, -limit, limit)


def make_params(key, node_num_1, node_num_2):
    dims = list(zip(node_num_1[:-1], node_num_1[1:])) + \
           list(zip(node_num_2[:-1], node_num_2[1:]))
    params = []
    for (din, dout) in dims:
        key, sub = jax.random.split(key)
        w = xavier_uniform(sub, dout, din)
        b = jnp.zeros((dout,), jnp.float32)   # nn.init.constant_(bias, 0)
        params.append((w, b))
    return params


def reference_forward(x, params):
    (w1, b1), (w2, b2), (w3, b3), (w4, b4) = params
    h = jnp.tanh(x @ w1.T + b1)
    z = jnp.tanh(h @ w2.T + b2)
    d = jnp.tanh(z @ w3.T + b3)
    rec = d @ w4.T + b4
    return rec, z


if __name__ == "__main__":
    node_num_1 = [16, 32, 2]   # encoder dims
    node_num_2 = [2, 32, 16]   # decoder dims
    B = 100                    # ragged on purpose: exercises the pad/slice path

    key = jax.random.PRNGKey(0)
    key_x, key_p = jax.random.split(key)
    x = jax.random.normal(key_x, (B, node_num_1[0]), jnp.float32)
    params = make_params(key_p, node_num_1, node_num_2)

    # f32 storage: strict numerical check against the pure-JAX reference.
    rec_f32, z_f32 = ae_net_forward(x, params, storage_dtype=jnp.float32)
    # bf16 storage (default): half the HBM traffic; looser tolerance.
    rec_bf16, z_bf16 = ae_net_forward(x, params)
    jax.block_until_ready((rec_f32, z_f32, rec_bf16, z_bf16))

    rec_ref, z_ref = reference_forward(x, params)
    assert rec_f32.shape == (B, node_num_2[-1]) and z_f32.shape == (B, node_num_1[-1])
    assert jnp.allclose(rec_f32, rec_ref, atol=1e-5)
    assert jnp.allclose(z_f32, z_ref, atol=1e-5)
    assert jnp.allclose(rec_bf16, rec_ref, atol=5e-2)
    assert jnp.allclose(z_bf16, z_ref, atol=5e-2)

    # TODO(synk): hierarchical (hi_variant 1/2) decoder paths not implemented;
    # only the standard (non-hierarchical) forward is covered.
    print("KERNEL_OK")
</pallas_src>

<mosaic_0001>
module attributes {stable_mosaic.version = 11 : i64} {
  func.func @ae_kernel(%arg0: i32, %arg1: memref<16x128xf32, #tpu.memory_space<vmem>>, %arg2: memref<32x16xf32, #tpu.memory_space<vmem>>, %arg3: memref<32x1xf32, #tpu.memory_space<vmem>>, %arg4: memref<2x32xf32, #tpu.memory_space<vmem>>, %arg5: memref<2x1xf32, #tpu.memory_space<vmem>>, %arg6: memref<32x2xf32, #tpu.memory_space<vmem>>, %arg7: memref<32x1xf32, #tpu.memory_space<vmem>>, %arg8: memref<16x32xf32, #tpu.memory_space<vmem>>, %arg9: memref<16x1xf32, #tpu.memory_space<vmem>>, %arg10: memref<16x128xf32, #tpu.memory_space<vmem>>, %arg11: memref<2x128xf32, #tpu.memory_space<vmem>>) attributes {dimension_semantics = [#tpu.dimension_semantics<parallel>], iteration_bounds = array<i64: 1>, scalar_prefetch = 0 : i64, scratch_operands = 0 : i64, tpu.core_type = #tpu.core_type<tc>, window_params = [{transform_indices = @transform_0, window_bounds = array<i64: 16, 128>}, {pipeline_mode = #tpu.pipeline_mode<synchronous>, transform_indices = @transform_1, window_bounds = array<i64: 32, 16>}, {pipeline_mode = #tpu.pipeline_mode<synchronous>, transform_indices = @transform_2, window_bounds = array<i64: 32, 1>}, {pipeline_mode = #tpu.pipeline_mode<synchronous>, transform_indices = @transform_3, window_bounds = array<i64: 2, 32>}, {pipeline_mode = #tpu.pipeline_mode<synchronous>, transform_indices = @transform_4, window_bounds = array<i64: 2, 1>}, {pipeline_mode = #tpu.pipeline_mode<synchronous>, transform_indices = @transform_5, window_bounds = array<i64: 32, 2>}, {pipeline_mode = #tpu.pipeline_mode<synchronous>, transform_indices = @transform_6, window_bounds = array<i64: 32, 1>}, {pipeline_mode = #tpu.pipeline_mode<synchronous>, transform_indices = @transform_7, window_bounds = array<i64: 16, 32>}, {pipeline_mode = #tpu.pipeline_mode<synchronous>, transform_indices = @transform_8, window_bounds = array<i64: 16, 1>}, {transform_indices = @transform_9, window_bounds = array<i64: 16, 128>}, {transform_indices = @transform_10, window_bounds = array<i64: 2, 128>}]} {
    %c0 = arith.constant 0 : index
    %c0_0 = arith.constant 0 : index
    %0 = vector.load %arg1[%c0, %c0_0] : memref<16x128xf32, #tpu.memory_space<vmem>>, vector<16x128xf32>
    %c0_1 = arith.constant 0 : index
    %c0_2 = arith.constant 0 : index
    %1 = vector.load %arg2[%c0_1, %c0_2] : memref<32x16xf32, #tpu.memory_space<vmem>>, vector<32x16xf32>
    %cst = arith.constant dense<0.000000e+00> : vector<32x128xf32>
    %2 = tpu.matmul %1, %0, %cst {dimension_numbers = #tpu.dot_dimension_numbers<[1], [0], [0], [1], [0, 0, 1, 1], [], []>} : vector<32x16xf32>, vector<16x128xf32>, vector<32x128xf32> -> vector<32x128xf32>
    %c0_3 = arith.constant 0 : index
    %c0_4 = arith.constant 0 : index
    %3 = vector.load %arg3[%c0_3, %c0_4] : memref<32x1xf32, #tpu.memory_space<vmem>>, vector<32x1xf32>
    %4 = vector.broadcast %3 : vector<32x1xf32> to vector<32x128xf32>
    %5 = arith.addf %2, %4 : vector<32x128xf32>
    %6 = math.tanh %5 : vector<32x128xf32>
    %c0_5 = arith.constant 0 : index
    %c0_6 = arith.constant 0 : index
    %7 = vector.load %arg4[%c0_5, %c0_6] : memref<2x32xf32, #tpu.memory_space<vmem>>, vector<2x32xf32>
    %cst_7 = arith.constant dense<0.000000e+00> : vector<2x128xf32>
    %8 = tpu.matmul %7, %6, %cst_7 {dimension_numbers = #tpu.dot_dimension_numbers<[1], [0], [0], [1], [0, 0, 1, 1], [], []>} : vector<2x32xf32>, vector<32x128xf32>, vector<2x128xf32> -> vector<2x128xf32>
    %c0_8 = arith.constant 0 : index
    %c0_9 = arith.constant 0 : index
    %9 = vector.load %arg5[%c0_8, %c0_9] : memref<2x1xf32, #tpu.memory_space<vmem>>, vector<2x1xf32>
    %10 = vector.broadcast %9 : vector<2x1xf32> to vector<2x128xf32>
    %11 = arith.addf %8, %10 : vector<2x128xf32>
    %12 = math.tanh %11 : vector<2x128xf32>
    %c0_10 = arith.constant 0 : index
    %c0_11 = arith.constant 0 : index
    %13 = vector.load %arg6[%c0_10, %c0_11] : memref<32x2xf32, #tpu.memory_space<vmem>>, vector<32x2xf32>
    %cst_12 = arith.constant dense<0.000000e+00> : vector<32x128xf32>
    %14 = tpu.matmul %13, %12, %cst_12 {dimension_numbers = #tpu.dot_dimension_numbers<[1], [0], [0], [1], [0, 0, 1, 1], [], []>} : vector<32x2xf32>, vector<2x128xf32>, vector<32x128xf32> -> vector<32x128xf32>
    %c0_13 = arith.constant 0 : index
    %c0_14 = arith.constant 0 : index
    %15 = vector.load %arg7[%c0_13, %c0_14] : memref<32x1xf32, #tpu.memory_space<vmem>>, vector<32x1xf32>
    %16 = vector.broadcast %15 : vector<32x1xf32> to vector<32x128xf32>
    %17 = arith.addf %14, %16 : vector<32x128xf32>
    %18 = math.tanh %17 : vector<32x128xf32>
    %c0_15 = arith.constant 0 : index
    %c0_16 = arith.constant 0 : index
    %19 = vector.load %arg8[%c0_15, %c0_16] : memref<16x32xf32, #tpu.memory_space<vmem>>, vector<16x32xf32>
    %cst_17 = arith.constant dense<0.000000e+00> : vector<16x128xf32>
    %20 = tpu.matmul %19, %18, %cst_17 {dimension_numbers = #tpu.dot_dimension_numbers<[1], [0], [0], [1], [0, 0, 1, 1], [], []>} : vector<16x32xf32>, vector<32x128xf32>, vector<16x128xf32> -> vector<16x128xf32>
    %c0_18 = arith.constant 0 : index
    %c0_19 = arith.constant 0 : index
    %21 = vector.load %arg9[%c0_18, %c0_19] : memref<16x1xf32, #tpu.memory_space<vmem>>, vector<16x1xf32>
    %22 = vector.broadcast %21 : vector<16x1xf32> to vector<16x128xf32>
    %23 = arith.addf %20, %22 : vector<16x128xf32>
    %c0_20 = arith.constant 0 : index
    %c0_21 = arith.constant 0 : index
    %24 = vector.load %arg10[%c0_20, %c0_21] : memref<16x128xf32, #tpu.memory_space<vmem>>, vector<16x128xf32>
    tpu.vector_store %arg10[%c0_20, %c0_21], %23 {strides = array<i32>} : memref<16x128xf32, #tpu.memory_space<vmem>>, vector<16x128xf32>,
    %c0_22 = arith.constant 0 : index
    %c0_23 = arith.constant 0 : index
    %25 = vector.load %arg11[%c0_22, %c0_23] : memref<2x128xf32, #tpu.memory_space<vmem>>, vector<2x128xf32>
    tpu.vector_store %arg11[%c0_22, %c0_23], %12 {strides = array<i32>} : memref<2x128xf32, #tpu.memory_space<vmem>>, vector<2x128xf32>,
    return
  }
  func.func @transform_0(%arg0: i32) -> (i32, i32) {
    %c0_i32 = arith.constant 0 : i32
    %c0_i32_0 = arith.constant 0 : i32
    return %c0_i32, %arg0 : i32, i32
  }
  func.func @transform_1(%arg0: i32) -> (i32, i32) {
    %c0_i32 = arith.constant 0 : i32
    %c0_i32_0 = arith.constant 0 : i32
    %c0_i32_1 = arith.constant 0 : i32
    return %c0_i32, %c0_i32_0 : i32, i32
  }
  func.func @transform_2(%arg0: i32) -> (i32, i32) {
    %c0_i32 = arith.constant 0 : i32
    %c0_i32_0 = arith.constant 0 : i32
    %c0_i32_1 = arith.constant 0 : i32
    return %c0_i32, %c0_i32_0 : i32, i32
  }
  func.func @transform_3(%arg0: i32) -> (i32, i32) {
    %c0_i32 = arith.constant 0 : i32
    %c0_i32_0 = arith.constant 0 : i32
    %c0_i32_1 = arith.constant 0 : i32
    return %c0_i32, %c0_i32_0 : i32, i32
  }
  func.func @transform_4(%arg0: i32) -> (i32, i32) {
    %c0_i32 = arith.constant 0 : i32
    %c0_i32_0 = arith.constant 0 : i32
    %c0_i32_1 = arith.constant 0 : i32
    return %c0_i32, %c0_i32_0 : i32, i32
  }
  func.func @transform_5(%arg0: i32) -> (i32, i32) {
    %c0_i32 = arith.constant 0 : i32
    %c0_i32_0 = arith.constant 0 : i32
    %c0_i32_1 = arith.constant 0 : i32
    return %c0_i32, %c0_i32_0 : i32, i32
  }
  func.func @transform_6(%arg0: i32) -> (i32, i32) {
    %c0_i32 = arith.constant 0 : i32
    %c0_i32_0 = arith.constant 0 : i32
    %c0_i32_1 = arith.constant 0 : i32
    return %c0_i32, %c0_i32_0 : i32, i32
  }
  func.func @transform_7(%arg0: i32) -> (i32, i32) {
    %c0_i32 = arith.constant 0 : i32
    %c0_i32_0 = arith.constant 0 : i32
    %c0_i32_1 = arith.constant 0 : i32
    return %c0_i32, %c0_i32_0 : i32, i32
  }
  func.func @transform_8(%arg0: i32) -> (i32, i32) {
    %c0_i32 = arith.constant 0 : i32
    %c0_i32_0 = arith.constant 0 : i32
    %c0_i32_1 = arith.constant 0 : i32
    return %c0_i32, %c0_i32_0 : i32, i32
  }
  func.func @transform_9(%arg0: i32) -> (i32, i32) {
    %c0_i32 = arith.constant 0 : i32
    %c0_i32_0 = arith.constant 0 : i32
    return %c0_i32, %arg0 : i32, i32
  }
  func.func @transform_10(%arg0: i32) -> (i32, i32) {
    %c0_i32 = arith.constant 0 : i32
    %c0_i32_0 = arith.constant 0 : i32
    return %c0_i32, %arg0 : i32, i32
  }
}

</mosaic_0001>

<llo_original>
// kernel: tpu_custom_call.1
$region0: #{tpu_custom_call.1}
  #allocation0 [shape = 'u32[]', space=smem, size = 0x4, offset = 0x4, fixed_abs, tag = 'smem constant byte address 0x4 - core index']
  #allocation1 [shape = 'u32[144,128]{1,0:T(1,128)}', space=vmem, size = 0x12000, scoped, tag = 'internal scratch']
  %s0 = inlined_call_operand.vmem [shape: f32[16,128], index: 0, kind: input, shape index: {}]
  %s1 = inlined_call_operand.vmem [shape: f32[32,16], index: 1, kind: input, shape index: {}]
  %s2 = inlined_call_operand.vmem [shape: f32[32,1], index: 2, kind: input, shape index: {}]
  %s3 = inlined_call_operand.vmem [shape: f32[2,32], index: 3, kind: input, shape index: {}]
  %s4 = inlined_call_operand.vmem [shape: f32[2,1], index: 4, kind: input, shape index: {}]
  %s5 = inlined_call_operand.vmem [shape: f32[32,2], index: 5, kind: input, shape index: {}]
  %s6 = inlined_call_operand.vmem [shape: f32[32,1], index: 6, kind: input, shape index: {}]
  %s7 = inlined_call_operand.vmem [shape: f32[16,32], index: 7, kind: input, shape index: {}]
  %s8 = inlined_call_operand.vmem [shape: f32[16,1], index: 8, kind: input, shape index: {}]
  %s9 = inlined_call_operand.hbm [shape: f32[16,128], index: 9, kind: output, shape index: {0}]
  %s10 = inlined_call_operand.hbm [shape: f32[2,128], index: 10, kind: output, shape index: {1}]
  %11 = xla_tuple %s9, %s10
  %s12 = sld [smem:[#allocation0]]
  $region54: #{tpu_custom_call.1} parent=0
    _
  %s14 = ssub.s32 1, %s12
  %s15 = scalar_select 0, %s14, %s12
  $region1: #{tpu_custom_call.1} parent=0
    #allocation2 [shape = 'u8[8192]{0}', space=vmem, size = 0x2000, scoped, tag = 'output window, operand 0, single buffered']
    #allocation3 [shape = 's32[1]{0}', space=sflag, size = 0x4, scoped, tag = 'scoped memory for tpu_custom_call.1']
    #allocation4 [shape = 'u8[1024]{0}', space=vmem, size = 0x400, scoped, tag = 'output window, operand 1, single buffered']
    #allocation5 [shape = 's32[1]{0}', space=sflag, size = 0x4, scoped, tag = 'scoped memory for tpu_custom_call.1']
    %16 = vsyncpa [#allocation3], 0
    %17 = vsyncpa [#allocation5], 0
    // Predicated region
    $region2: #{tpu_custom_call.1} parent=1 // pred_check
      _
    $region3: #{tpu_custom_call.1} parent=1 // pred_check_branch
      %19 = sbr.rel (0) target = $region5
    $region4: #{tpu_custom_call.1} parent=1 // pred_region
      _
    $region5: #{tpu_custom_call.1} parent=1 // pred_fallthru
      _
    // Predicated region
    $region6: #{tpu_custom_call.1} parent=1 // pred_check
      _
    $region7: #{tpu_custom_call.1} parent=1 // pred_check_branch
      %21 = sbr.rel (0) target = $region9
    $region8: #{tpu_custom_call.1} parent=1 // pred_region
      _
    $region9: #{tpu_custom_call.1} parent=1 // pred_fallthru
      _
    // Predicated region
    $region10: #{tpu_custom_call.1} parent=1 // pred_check
      _
    $region11: #{tpu_custom_call.1} parent=1 // pred_check_branch
      %23 = sbr.rel (0) target = $region13
    $region12: #{tpu_custom_call.1} parent=1 // pred_region
      _
    $region13: #{tpu_custom_call.1} parent=1 // pred_fallthru
      _
    // Predicated region
    $region14: #{tpu_custom_call.1} parent=1 // pred_check
      _
    $region15: #{tpu_custom_call.1} parent=1 // pred_check_branch
      %25 = sbr.rel (0) target = $region17
    $region16: #{tpu_custom_call.1} parent=1 // pred_region
      _
    $region17: #{tpu_custom_call.1} parent=1 // pred_fallthru
      _
    // Predicated region
    $region18: #{tpu_custom_call.1} parent=1 // pred_check
      _
    $region19: #{tpu_custom_call.1} parent=1 // pred_check_branch
      %27 = sbr.rel (0) target = $region21
    $region20: #{tpu_custom_call.1} parent=1 // pred_region
      _
    $region21: #{tpu_custom_call.1} parent=1 // pred_fallthru
      _
    // Predicated region
    $region22: #{tpu_custom_call.1} parent=1 // pred_check
      _
    $region23: #{tpu_custom_call.1} parent=1 // pred_check_branch
      %29 = sbr.rel (0) target = $region25
    $region24: #{tpu_custom_call.1} parent=1 // pred_region
      _
    $region25: #{tpu_custom_call.1} parent=1 // pred_fallthru
      _
    // Predicated region
    $region26: #{tpu_custom_call.1} parent=1 // pred_check
      _
    $region27: #{tpu_custom_call.1} parent=1 // pred_check_branch
      %31 = sbr.rel (0) target = $region29
    $region28: #{tpu_custom_call.1} parent=1 // pred_region
      _
    $region29: #{tpu_custom_call.1} parent=1 // pred_fallthru
      _
    // Predicated region
    $region30: #{tpu_custom_call.1} parent=1 // pred_check
      _
    $region31: #{tpu_custom_call.1} parent=1 // pred_check_branch
      %33 = sbr.rel (0) target = $region33
    $region32: #{tpu_custom_call.1} parent=1 // pred_region
      _
    $region33: #{tpu_custom_call.1} parent=1 // pred_fallthru
      _
    // Predicated region
    $region34: #{tpu_custom_call.1} parent=1 // pred_check
      _
    $region35: #{tpu_custom_call.1} parent=1 // pred_check_branch
      %35 = sbr.rel (0) target = $region37
    $region36: #{tpu_custom_call.1} parent=1 // pred_region
      _
    $region37: #{tpu_custom_call.1} parent=1 // pred_fallthru
      _
    %v36 = vld [vmem:[%s0] sm:$0xff]
    %v37 = vld [vmem:[%s0 + $0x8] sm:$0xff]
    %v38 = vld [vmem:[%s1] sm:$0xff]
    %v39 = vld [vmem:[%s1 + $0x8] sm:$0xff]
    %v40 = vld [vmem:[%s1 + $0x10] sm:$0xff]
    %v41 = vld [vmem:[%s1 + $0x18] sm:$0xff]
    %v42 = vld [vmem:[%s2] sm:$0xff]
    %v43 = vld [vmem:[%s2 + $0x8] sm:$0xff]
    %v44 = vld [vmem:[%s2 + $0x10] sm:$0xff]
    %v45 = vld [vmem:[%s2 + $0x18] sm:$0xff]
    %47 = vset.pattern.permute.xlu0 0
    %48 = vperm.xlu0 %47, %v42
    %v49 = vpop.permute.xlu0 %48
    %52 = vset.pattern.permute.xlu0 0
    %53 = vperm.xlu0 %52, %v43
    %v54 = vpop.permute.xlu0 %53
    %57 = vset.pattern.permute.xlu0 0
    %58 = vperm.xlu0 %57, %v44
    %v59 = vpop.permute.xlu0 %58
    %62 = vset.pattern.permute.xlu0 0
    %63 = vperm.xlu0 %62, %v45
    %v64 = vpop.permute.xlu0 %63
    %vm66 = vcmask 130048
    %v68 = vsel %vm66, %v38, 0
    %v71 = vsel %vm66, %v39, 0
    %v74 = vsel %vm66, %v40, 0
    %v77 = vsel %vm66, %v41, 0
    %79 = vmatprep.subr.mxu0 0.0
    %80 = vmatpush1.msra.mxu0 %v36
    %81 = vmatprep.subr.mxu0 0.0
    %82 = vmatpush1.msra.mxu0 %v37
    %83 = vmatprep.subr.mxu0 0.0
    %84 = vmatpush1.msra.mxu0 0.0
    %85 = vmatprep.subr.mxu0 0.0
    %86 = vmatpush1.msra.mxu0 0.0
    %87 = vmatprep.subr.mxu0 0.0
    %88 = vmatpush1.msra.mxu0 0.0
    %89 = vmatprep.subr.mxu0 0.0
    %90 = vmatpush1.msra.mxu0 0.0
    %91 = vmatprep.subr.mxu0 0.0
    %92 = vmatpush1.msra.mxu0 0.0
    %93 = vmatprep.subr.mxu0 0.0
    %94 = vmatpush1.msra.mxu0 0.0
    %95 = vmatprep.subr.mxu0 0.0
    %96 = vmatpush1.msra.mxu0 0.0
    %97 = vmatprep.subr.mxu0 0.0
    %98 = vmatpush1.msra.mxu0 0.0
    %99 = vmatprep.subr.mxu0 0.0
    %100 = vmatpush1.msra.mxu0 0.0
    %101 = vmatprep.subr.mxu0 0.0
    %102 = vmatpush1.msra.mxu0 0.0
    %103 = vmatprep.subr.mxu0 0.0
    %104 = vmatpush1.msra.mxu0 0.0
    %105 = vmatprep.subr.mxu0 0.0
    %106 = vmatpush1.msra.mxu0 0.0
    %107 = vmatprep.subr.mxu0 0.0
    %108 = vmatpush1.msra.mxu0 0.0
    %109 = vmatprep.subr.mxu0 0.0
    %110 = vmatpush1.msra.mxu0 0.0
    %111 = vmatprep.subr.mxu0 0.0
    %112 = vmatpush1.msra.mxu0 0.0
    %113 = vmatprep.subr.mxu0 0.0
    %114 = vmatpush1.msra.mxu0 0.0
    %115 = vmatprep.subr.mxu0 0.0
    %116 = vmatpush1.msra.mxu0 0.0
    %117 = vmatprep.subr.mxu0 0.0
    %118 = vmatpush1.msra.mxu0 0.0
    %119 = vmatprep.subr.mxu0 0.0
    %120 = vmatpush1.msra.mxu0 0.0
    %121 = vmatprep.subr.mxu0 0.0
    %122 = vmatpush1.msra.mxu0 0.0
    %123 = vmatprep.subr.mxu0 0.0
    %124 = vmatpush1.msra.mxu0 0.0
    %125 = vmatprep.subr.mxu0 0.0
    %126 = vmatpush1.msra.mxu0 0.0
    %127 = vmatprep.subr.mxu0 0.0
    %128 = vmatpush1.msra.mxu0 0.0
    %129 = vmatprep.subr.mxu0 0.0
    %130 = vmatpush1.msra.mxu0 0.0
    %131 = vmatprep.subr.mxu0 0.0
    %132 = vmatpush1.msra.mxu0 0.0
    %133 = vmatprep.subr.mxu0 0.0
    %134 = vmatpush1.msra.mxu0 0.0
    %135 = vmatprep.subr.mxu0 0.0
    %136 = vmatpush1.msra.mxu0 0.0
    %137 = vmatprep.subr.mxu0 0.0
    %138 = vmatpush1.msra.mxu0 0.0
    %139 = vmatprep.subr.mxu0 0.0
    %140 = vmatpush1.msra.mxu0 0.0
    %141 = vmatprep.subr.mxu0 0.0
    %142 = vmatpush1.msra.mxu0 0.0
    %143 = vmatprep.mubr.f32.mxu0 0.0
    %144 = vmatmul.mubr.f32.gmra.mrb[0].mxu0 %v68
    %v145 = vpop.f32.mrb[0].mxu0
    %v146 = vadd.f32 %v49, %v145
    %v147 = vpop.f32.mrb[0].mxu0
    %148 = vmatprep.mubr.f32.mxu0 0.0
    %149 = vmatmul.mubr.f32.gmra.mrb[0].mxu0 %v71
    %v150 = vpop.f32.mrb[0].mxu0
    %v151 = vadd.f32 %v54, %v150
    %v152 = vpop.f32.mrb[0].mxu0
    %153 = vmatprep.mubr.f32.mxu0 0.0
    %154 = vmatmul.mubr.f32.gmra.mrb[0].mxu0 %v74
    %v155 = vpop.f32.mrb[0].mxu0
    %v156 = vadd.f32 %v59, %v155
    %v157 = vpop.f32.mrb[0].mxu0
    %158 = vmatprep.mubr.f32.mxu0 0.0
    %159 = vmatmul.mubr.f32.gmra.mrb[0].mxu0 %v77
    %v160 = vpop.f32.mrb[0].mxu0
    %v161 = vadd.f32 %v64, %v160
    %v162 = vpop.f32.mrb[0].mxu0
    %163 = vdwg.mxu0
    %v164 = vtanh.pop %v146
    %v165 = vtanh.pop %v151
    %v166 = vtanh.pop %v156
    %v167 = vtanh.pop %v161
    %v168 = vld [vmem:[%s3] sm:$0x3]
    %v169 = vld [vmem:[%s4] sm:$0x3]
    %171 = vset.pattern.permute.xlu0 0
    %172 = vperm.xlu0 %171, %v169
    %v173 = vpop.permute.xlu0 %172
    %vm175 = vcmask 261120
    %v177 = vsel %vm175, %v168, 0
    %179 = vmatprep.subr.mxu0 0.0
    %180 = vmatpush1.msra.mxu0 %v164
    %181 = vmatprep.subr.mxu0 0.0
    %182 = vmatpush1.msra.mxu0 %v165
    %183 = vmatprep.subr.mxu0 0.0
    %184 = vmatpush1.msra.mxu0 %v166
    %185 = vmatprep.subr.mxu0 0.0
    %186 = vmatpush1.msra.mxu0 %v167
    %187 = vmatprep.subr.mxu0 0.0
    %188 = vmatpush1.msra.mxu0 0.0
    %189 = vmatprep.subr.mxu0 0.0
    %190 = vmatpush1.msra.mxu0 0.0
    %191 = vmatprep.subr.mxu0 0.0
    %192 = vmatpush1.msra.mxu0 0.0
    %193 = vmatprep.subr.mxu0 0.0
    %194 = vmatpush1.msra.mxu0 0.0
    %195 = vmatprep.subr.mxu0 0.0
    %196 = vmatpush1.msra.mxu0 0.0
    %197 = vmatprep.subr.mxu0 0.0
    %198 = vmatpush1.msra.mxu0 0.0
    %199 = vmatprep.subr.mxu0 0.0
    %200 = vmatpush1.msra.mxu0 0.0
    %201 = vmatprep.subr.mxu0 0.0
    %202 = vmatpush1.msra.mxu0 0.0
    %203 = vmatprep.subr.mxu0 0.0
    %204 = vmatpush1.msra.mxu0 0.0
    %205 = vmatprep.subr.mxu0 0.0
    %206 = vmatpush1.msra.mxu0 0.0
    %207 = vmatprep.subr.mxu0 0.0
    %208 = vmatpush1.msra.mxu0 0.0
    %209 = vmatprep.subr.mxu0 0.0
    %210 = vmatpush1.msra.mxu0 0.0
    %211 = vmatprep.subr.mxu0 0.0
    %212 = vmatpush1.msra.mxu0 0.0
    %213 = vmatprep.subr.mxu0 0.0
    %214 = vmatpush1.msra.mxu0 0.0
    %215 = vmatprep.subr.mxu0 0.0
    %216 = vmatpush1.msra.mxu0 0.0
    %217 = vmatprep.subr.mxu0 0.0
    %218 = vmatpush1.msra.mxu0 0.0
    %219 = vmatprep.subr.mxu0 0.0
    %220 = vmatpush1.msra.mxu0 0.0
    %221 = vmatprep.subr.mxu0 0.0
    %222 = vmatpush1.msra.mxu0 0.0
    %223 = vmatprep.subr.mxu0 0.0
    %224 = vmatpush1.msra.mxu0 0.0
    %225 = vmatprep.subr.mxu0 0.0
    %226 = vmatpush1.msra.mxu0 0.0
    %227 = vmatprep.subr.mxu0 0.0
    %228 = vmatpush1.msra.mxu0 0.0
    %229 = vmatprep.subr.mxu0 0.0
    %230 = vmatpush1.msra.mxu0 0.0
    %231 = vmatprep.subr.mxu0 0.0
    %232 = vmatpush1.msra.mxu0 0.0
    %233 = vmatprep.subr.mxu0 0.0
    %234 = vmatpush1.msra.mxu0 0.0
    %235 = vmatprep.subr.mxu0 0.0
    %236 = vmatpush1.msra.mxu0 0.0
    %237 = vmatprep.subr.mxu0 0.0
    %238 = vmatpush1.msra.mxu0 0.0
    %239 = vmatprep.subr.mxu0 0.0
    %240 = vmatpush1.msra.mxu0 0.0
    %241 = vmatprep.subr.mxu0 0.0
    %242 = vmatpush1.msra.mxu0 0.0
    %243 = vmatprep.mubr.f32.mxu0 0.0
    %244 = vmatmul.mubr.f32.gmra.mrb[0].mxu0 %v177
    %v245 = vpop.f32.mrb[0].mxu0
    %v246 = vadd.f32 %v173, %v245
    %v247 = vpop.f32.mrb[0].mxu0
    %248 = vdwg.mxu0
    %v249 = vtanh.pop %v246
    %v250 = vld [vmem:[%s5] sm:$0xff]
    %v251 = vld [vmem:[%s5 + $0x8] sm:$0xff]
    %v252 = vld [vmem:[%s5 + $0x10] sm:$0xff]
    %v253 = vld [vmem:[%s5 + $0x18] sm:$0xff]
    %v254 = vld [vmem:[%s6] sm:$0xff]
    %v255 = vld [vmem:[%s6 + $0x8] sm:$0xff]
    %v256 = vld [vmem:[%s6 + $0x10] sm:$0xff]
    %v257 = vld [vmem:[%s6 + $0x18] sm:$0xff]
    %259 = vset.pattern.permute.xlu0 0
    %260 = vperm.xlu0 %259, %v254
    %v261 = vpop.permute.xlu0 %260
    %264 = vset.pattern.permute.xlu0 0
    %265 = vperm.xlu0 %264, %v255
    %v266 = vpop.permute.xlu0 %265
    %269 = vset.pattern.permute.xlu0 0
    %270 = vperm.xlu0 %269, %v256
    %v271 = vpop.permute.xlu0 %270
    %274 = vset.pattern.permute.xlu0 0
    %275 = vperm.xlu0 %274, %v257
    %v276 = vpop.permute.xlu0 %275
    %vm278 = vcmask 15360
    %v280 = vsel %vm278, %v250, 0
    %v283 = vsel %vm278, %v251, 0
    %v286 = vsel %vm278, %v252, 0
    %v289 = vsel %vm278, %v253, 0
    %vm291 = vcmask 1041408
    %v293 = vsel %vm291, %v249, 0
    %295 = vmatprep.subr.mxu0 0.0
    %296 = vmatpush1.msra.mxu0 %v293
    %297 = vmatprep.subr.mxu0 0.0
    %298 = vmatpush1.msra.mxu0 0.0
    %299 = vmatprep.subr.mxu0 0.0
    %300 = vmatpush1.msra.mxu0 0.0
    %301 = vmatprep.subr.mxu0 0.0
    %302 = vmatpush1.msra.mxu0 0.0
    %303 = vmatprep.subr.mxu0 0.0
    %304 = vmatpush1.msra.mxu0 0.0
    %305 = vmatprep.subr.mxu0 0.0
    %306 = vmatpush1.msra.mxu0 0.0
    %307 = vmatprep.subr.mxu0 0.0
    %308 = vmatpush1.msra.mxu0 0.0
    %309 = vmatprep.subr.mxu0 0.0
    %310 = vmatpush1.msra.mxu0 0.0
    %311 = vmatprep.subr.mxu0 0.0
    %312 = vmatpush1.msra.mxu0 0.0
    %313 = vmatprep.subr.mxu0 0.0
    %314 = vmatpush1.msra.mxu0 0.0
    %315 = vmatprep.subr.mxu0 0.0
    %316 = vmatpush1.msra.mxu0 0.0
    %317 = vmatprep.subr.mxu0 0.0
    %318 = vmatpush1.msra.mxu0 0.0
    %319 = vmatprep.subr.mxu0 0.0
    %320 = vmatpush1.msra.mxu0 0.0
    %321 = vmatprep.subr.mxu0 0.0
    %322 = vmatpush1.msra.mxu0 0.0
    %323 = vmatprep.subr.mxu0 0.0
    %324 = vmatpush1.msra.mxu0 0.0
    %325 = vmatprep.subr.mxu0 0.0
    %326 = vmatpush1.msra.mxu0 0.0
    %327 = vmatprep.subr.mxu0 0.0
    %328 = vmatpush1.msra.mxu0 0.0
    %329 = vmatprep.subr.mxu0 0.0
    %330 = vmatpush1.msra.mxu0 0.0
    %331 = vmatprep.subr.mxu0 0.0
    %332 = vmatpush1.msra.mxu0 0.0
    %333 = vmatprep.subr.mxu0 0.0
    %334 = vmatpush1.msra.mxu0 0.0
    %335 = vmatprep.subr.mxu0 0.0
    %336 = vmatpush1.msra.mxu0 0.0
    %337 = vmatprep.subr.mxu0 0.0
    %338 = vmatpush1.msra.mxu0 0.0
    %339 = vmatprep.subr.mxu0 0.0
    %340 = vmatpush1.msra.mxu0 0.0
    %341 = vmatprep.subr.mxu0 0.0
    %342 = vmatpush1.msra.mxu0 0.0
    %343 = vmatprep.subr.mxu0 0.0
    %344 = vmatpush1.msra.mxu0 0.0
    %345 = vmatprep.subr.mxu0 0.0
    %346 = vmatpush1.msra.mxu0 0.0
    %347 = vmatprep.subr.mxu0 0.0
    %348 = vmatpush1.msra.mxu0 0.0
    %349 = vmatprep.subr.mxu0 0.0
    %350 = vmatpush1.msra.mxu0 0.0
    %351 = vmatprep.subr.mxu0 0.0
    %352 = vmatpush1.msra.mxu0 0.0
    %353 = vmatprep.subr.mxu0 0.0
    %354 = vmatpush1.msra.mxu0 0.0
    %355 = vmatprep.subr.mxu0 0.0
    %356 = vmatpush1.msra.mxu0 0.0
    %357 = vmatprep.subr.mxu0 0.0
    %358 = vmatpush1.msra.mxu0 0.0
    %359 = vmatprep.mubr.f32.mxu0 0.0
    %360 = vmatmul.mubr.f32.gmra.mrb[0].mxu0 %v280
    %v361 = vpop.f32.mrb[0].mxu0
    %v362 = vadd.f32 %v261, %v361
    %v363 = vpop.f32.mrb[0].mxu0
    %364 = vmatprep.mubr.f32.mxu0 0.0
    %365 = vmatmul.mubr.f32.gmra.mrb[0].mxu0 %v283
    %v366 = vpop.f32.mrb[0].mxu0
    %v367 = vadd.f32 %v266, %v366
    %v368 = vpop.f32.mrb[0].mxu0
    %369 = vmatprep.mubr.f32.mxu0 0.0
    %370 = vmatmul.mubr.f32.gmra.mrb[0].mxu0 %v286
    %v371 = vpop.f32.mrb[0].mxu0
    %v372 = vadd.f32 %v271, %v371
    %v373 = vpop.f32.mrb[0].mxu0
    %374 = vmatprep.mubr.f32.mxu0 0.0
    %375 = vmatmul.mubr.f32.gmra.mrb[0].mxu0 %v289
    %v376 = vpop.f32.mrb[0].mxu0
    %v377 = vadd.f32 %v276, %v376
    %v378 = vpop.f32.mrb[0].mxu0
    %379 = vdwg.mxu0
    %v380 = vtanh.pop %v362
    %v381 = vtanh.pop %v367
    %v382 = vtanh.pop %v372
    %v383 = vtanh.pop %v377
    %v384 = vld [vmem:[%s7] sm:$0xff]
    %v385 = vld [vmem:[%s7 + $0x8] sm:$0xff]
    %v386 = vld [vmem:[%s8] sm:$0xff]
    %v387 = vld [vmem:[%s8 + $0x8] sm:$0xff]
    %389 = vset.pattern.permute.xlu0 0
    %390 = vperm.xlu0 %389, %v386
    %v391 = vpop.permute.xlu0 %390
    %394 = vset.pattern.permute.xlu0 0
    %395 = vperm.xlu0 %394, %v387
    %v396 = vpop.permute.xlu0 %395
    %v399 = vsel %vm175, %v384, 0
    %v402 = vsel %vm175, %v385, 0
    %404 = vmatprep.subr.mxu0 0.0
    %405 = vmatpush1.msra.mxu0 %v380
    %406 = vmatprep.subr.mxu0 0.0
    %407 = vmatpush1.msra.mxu0 %v381
    %408 = vmatprep.subr.mxu0 0.0
    %409 = vmatpush1.msra.mxu0 %v382
    %410 = vmatprep.subr.mxu0 0.0
    %411 = vmatpush1.msra.mxu0 %v383
    %412 = vmatprep.subr.mxu0 0.0
    %413 = vmatpush1.msra.mxu0 0.0
    %414 = vmatprep.subr.mxu0 0.0
    %415 = vmatpush1.msra.mxu0 0.0
    %416 = vmatprep.subr.mxu0 0.0
    %417 = vmatpush1.msra.mxu0 0.0
    %418 = vmatprep.subr.mxu0 0.0
    %419 = vmatpush1.msra.mxu0 0.0
    %420 = vmatprep.subr.mxu0 0.0
    %421 = vmatpush1.msra.mxu0 0.0
    %422 = vmatprep.subr.mxu0 0.0
    %423 = vmatpush1.msra.mxu0 0.0
    %424 = vmatprep.subr.mxu0 0.0
    %425 = vmatpush1.msra.mxu0 0.0
    %426 = vmatprep.subr.mxu0 0.0
    %427 = vmatpush1.msra.mxu0 0.0
    %428 = vmatprep.subr.mxu0 0.0
    %429 = vmatpush1.msra.mxu0 0.0
    %430 = vmatprep.subr.mxu0 0.0
    %431 = vmatpush1.msra.mxu0 0.0
    %432 = vmatprep.subr.mxu0 0.0
    %433 = vmatpush1.msra.mxu0 0.0
    %434 = vmatprep.subr.mxu0 0.0
    %435 = vmatpush1.msra.mxu0 0.0
    %436 = vmatprep.subr.mxu0 0.0
    %437 = vmatpush1.msra.mxu0 0.0
    %438 = vmatprep.subr.mxu0 0.0
    %439 = vmatpush1.msra.mxu0 0.0
    %440 = vmatprep.subr.mxu0 0.0
    %441 = vmatpush1.msra.mxu0 0.0
    %442 = vmatprep.subr.mxu0 0.0
    %443 = vmatpush1.msra.mxu0 0.0
    %444 = vmatprep.subr.mxu0 0.0
    %445 = vmatpush1.msra.mxu0 0.0
    %446 = vmatprep.subr.mxu0 0.0
    %447 = vmatpush1.msra.mxu0 0.0
    %448 = vmatprep.subr.mxu0 0.0
    %449 = vmatpush1.msra.mxu0 0.0
    %450 = vmatprep.subr.mxu0 0.0
    %451 = vmatpush1.msra.mxu0 0.0
    %452 = vmatprep.subr.mxu0 0.0
    %453 = vmatpush1.msra.mxu0 0.0
    %454 = vmatprep.subr.mxu0 0.0
    %455 = vmatpush1.msra.mxu0 0.0
    %456 = vmatprep.subr.mxu0 0.0
    %457 = vmatpush1.msra.mxu0 0.0
    %458 = vmatprep.subr.mxu0 0.0
    %459 = vmatpush1.msra.mxu0 0.0
    %460 = vmatprep.subr.mxu0 0.0
    %461 = vmatpush1.msra.mxu0 0.0
    %462 = vmatprep.subr.mxu0 0.0
    %463 = vmatpush1.msra.mxu0 0.0
    %464 = vmatprep.subr.mxu0 0.0
    %465 = vmatpush1.msra.mxu0 0.0
    %466 = vmatprep.subr.mxu0 0.0
    %467 = vmatpush1.msra.mxu0 0.0
    %468 = vmatprep.mubr.f32.mxu0 0.0
    %469 = vmatmul.mubr.f32.gmra.mrb[0].mxu0 %v399
    %v470 = vpop.f32.mrb[0].mxu0
    %v471 = vadd.f32 %v391, %v470
    %v472 = vpop.f32.mrb[0].mxu0
    %473 = vmatprep.mubr.f32.mxu0 0.0
    %474 = vmatmul.mubr.f32.gmra.mrb[0].mxu0 %v402
    %v475 = vpop.f32.mrb[0].mxu0
    %v476 = vadd.f32 %v396, %v475
    %v477 = vpop.f32.mrb[0].mxu0
    %478 = vdwg.mxu0
    %479 = vst [vmem:[#allocation2] sm:$0xff] %v471
    %480 = vst [vmem:[#allocation2 + $0x8] sm:$0xff] %v476
    %481 = vst [vmem:[#allocation4] sm:$0x3] %v249
    // Predicated region
    $region38: #{tpu_custom_call.1} parent=1 // pred_check
      _
    $region39: #{tpu_custom_call.1} parent=1 // pred_check_branch
      %483 = sbr.rel (0) target = $region41
    $region40: #{tpu_custom_call.1} parent=1 // pred_region
      %s485 = ssub.s32 256, 256
      %486 = vsyncadd [#allocation3], %s485
      %s487 = sshll.u32 [#allocation2], 4
      %s488 = int_to_ptr.vmem [resolvable:$true] %s487
      %493 = dma.vmem_to_hbm [thread:$0]  %s488, 256, %s9, [#allocation3], 128, 128, 8
    $region41: #{tpu_custom_call.1} parent=1 // pred_fallthru
      _
    // Predicated region
    $region42: #{tpu_custom_call.1} parent=1 // pred_check
      _
    $region43: #{tpu_custom_call.1} parent=1 // pred_check_branch
      %495 = sbr.rel (0) target = $region45
    $region44: #{tpu_custom_call.1} parent=1 // pred_region
      %s497 = ssub.s32 32, 32
      %498 = vsyncadd [#allocation5], %s497
      %s500 = sshll.u32 [#allocation4], 4
      %s501 = int_to_ptr.vmem [resolvable:$true] %s500
      %503 = dma.vmem_to_hbm [thread:$0]  %s501, 32, %s10, [#allocation5]
    $region45: #{tpu_custom_call.1} parent=1 // pred_fallthru
      _
    // Predicated region
    $region46: #{tpu_custom_call.1} parent=1 // pred_check
      _
    $region47: #{tpu_custom_call.1} parent=1 // pred_check_branch
      %505 = sbr.rel (0) target = $region49
    $region48: #{tpu_custom_call.1} parent=1 // pred_region
      %506 = dma.done [#allocation3], 256
    $region49: #{tpu_custom_call.1} parent=1 // pred_fallthru
      _
    // Predicated region
    $region50: #{tpu_custom_call.1} parent=1 // pred_check
      _
    $region51: #{tpu_custom_call.1} parent=1 // pred_check_branch
      %508 = sbr.rel (0) target = $region53
    $region52: #{tpu_custom_call.1} parent=1 // pred_region
      %509 = dma.done [#allocation5], 32
    $region53: #{tpu_custom_call.1} parent=1 // pred_fallthru
      _
    %510 = vsyncpa [#allocation3], 1
    %511 = vsyncpa [#allocation5], 1

</llo_original>
